<compile_context>
chip_gen: v7x
topology: tpu7x:2x2x1
jax: 0.10.0
libtpu: 0.0.40
codegen_flags: <defaults>
</compile_context>

<pallas_src>
import jax
import jax.numpy as jnp
from jax.experimental import pallas as pl
from jax.experimental.pallas import tpu as pltpu


def cnn_kernel(x_ref, wc_ref, bc_ref, wr_ref, bf_ref, o_ref):
    # x_ref: (TB*S, I)   batch*seq folded into M
    # wc_ref: (I, H)     conv weight, pre-transposed
    # bc_ref: (1, H)     conv bias
    # wr_ref: (S, H, O)  fc weight, pre-permuted so wr[s, h, o] = Wfc[o, h*S + s]
    # bf_ref: (1, O)     fc bias
    # o_ref : (TB, O)
    ms, _ = x_ref.shape
    seq, hid, out_dim = wr_ref.shape
    tb = ms // seq

    # Conv1d(kernel_size=1) == pointwise linear over channels, run as one
    # (TB*S, I) @ (I, H) matmul on the MXU, then bias + ReLU on the VPU.
    h = jnp.dot(x_ref[...], wc_ref[...], preferred_element_type=jnp.float32)
    h = jnp.maximum(h + bc_ref[...], 0.0)              # (TB*S, H)

    # Layout-preserving split of the leading dim (S == 8 == sublane tile).
    h3 = h.reshape(tb, seq, hid)                       # (TB, S, H)

    # fc over Flatten(H, S): out[b, o] = sum_s sum_h h3[b, s, h] * wr[s, h, o]
    wr = wr_ref[...]                                   # (S, H, O)
    acc = jnp.zeros((tb, out_dim), dtype=jnp.float32)
    for s in range(seq):                               # static, unrolled (S is small)
        acc = acc + jnp.dot(h3[:, s, :], wr[s],
                            preferred_element_type=jnp.float32)

    # TODO(synk): for large batches an (O, B) lane-dense output layout would
    # avoid the masked 4-lane store; with one tile here it is a single store.
    o_ref[...] = acc + bf_ref[...]


def cnn_forward(x, conv_w, conv_b, fc_w, fc_b, *, tb=None):
    """x: (B, S, I); conv_w: (H, I); conv_b: (H,); fc_w: (O, H*S); fc_b: (O,)."""
    B, S, I = x.shape
    H = conv_w.shape[0]
    O = fc_w.shape[0]
    assert S % 8 == 0, "seq_len must be a multiple of the sublane tile (8)"
    if tb is None:
        tb = B if B <= 8 else 8                        # batch tile (rows of the out block)

    # Parameter re-layout (pure XLA, outside the kernel; done once).
    wc_t = conv_w.T                                    # (I, H)
    bc = conv_b.reshape(1, H)
    wr = jnp.transpose(fc_w.reshape(O, H, S), (2, 1, 0))   # (S, H, O)
    bf = fc_b.reshape(1, O)
    x2d = x.reshape(B * S, I)                          # fold batch into M (free)

    grid = (pl.cdiv(B, tb),)
    flops = 2 * B * S * I * H + 2 * B * S * H * O
    bytes_accessed = 4 * (B * S * I + I * H + H + S * H * O + O + B * O)

    return pl.pallas_call(
        cnn_kernel,
        out_shape=jax.ShapeDtypeStruct((B, O), jnp.float32),
        grid_spec=pltpu.PrefetchScalarGridSpec(
            num_scalar_prefetch=0,
            grid=grid,
            in_specs=[
                pl.BlockSpec((tb * S, I), lambda b: (b, 0)),      # x, batch tile
                pl.BlockSpec((I, H), lambda b: (0, 0)),           # conv weight (resident)
                pl.BlockSpec((1, H), lambda b: (0, 0)),           # conv bias
                pl.BlockSpec((S, H, O), lambda b: (0, 0, 0)),     # fc weight (resident)
                pl.BlockSpec((1, O), lambda b: (0, 0)),           # fc bias
            ],
            out_specs=pl.BlockSpec((tb, O), lambda b: (b, 0)),
        ),
        compiler_params=pltpu.CompilerParams(
            dimension_semantics=("parallel",)),
        cost_estimate=pl.CostEstimate(flops=flops, transcendentals=0,
                                      bytes_accessed=bytes_accessed),
    )(x2d, wc_t, bc, wr, bf)


def reference_forward(x, conv_w, conv_b, fc_w, fc_b):
    """Pure-JAX reference matching the PyTorch CNN module semantics."""
    conv = jnp.einsum("bsi,hi->bhs", x, conv_w) + conv_b[None, :, None]  # (B, H, S)
    r = jnp.maximum(conv, 0.0)
    flat = r.reshape(r.shape[0], -1)                   # (B, H*S), h-major like Flatten
    return flat @ fc_w.T + fc_b                        # (B, O)


if __name__ == "__main__":
    # Small shapes consistent with the module's forward: x is (B, seq_len, input_size).
    B, S, I, H, O = 2, 8, 16, 32, 4

    key = jax.random.PRNGKey(0)
    kx, kcw, kcb, kfw, kfb = jax.random.split(key, 5)

    x = jax.random.normal(kx, (B, S, I), dtype=jnp.float32)
    # Conv1d weight is (H, I, 1) in PyTorch; kernel_size=1 -> use (H, I).
    conv_w = jax.random.normal(kcw, (H, I), dtype=jnp.float32) * 0.1
    conv_b = jax.random.normal(kcb, (H,), dtype=jnp.float32) * 0.1
    fc_w = jax.random.normal(kfw, (O, H * S), dtype=jnp.float32) * 0.1
    fc_b = jax.random.normal(kfb, (O,), dtype=jnp.float32) * 0.1

    out = cnn_forward(x, conv_w, conv_b, fc_w, fc_b)
    out = jax.block_until_ready(out)

    ref = reference_forward(x, conv_w, conv_b, fc_w, fc_b)
    assert out.shape == (B, O), out.shape
    assert jnp.allclose(out, ref, atol=1e-5, rtol=1e-5), (out, ref)

    print("KERNEL_OK")
</pallas_src>

<mosaic_0001>
module attributes {stable_mosaic.version = 11 : i64} {
  func.func @cnn_kernel(%arg0: i32, %arg1: memref<16x16xf32, #tpu.memory_space<vmem>>, %arg2: memref<16x32xf32, #tpu.memory_space<vmem>>, %arg3: memref<1x32xf32, #tpu.memory_space<vmem>>, %arg4: memref<8x32x4xf32, #tpu.memory_space<vmem>>, %arg5: memref<1x4xf32, #tpu.memory_space<vmem>>, %arg6: memref<2x4xf32, #tpu.memory_space<vmem>>) attributes {dimension_semantics = [#tpu.dimension_semantics<parallel>], iteration_bounds = array<i64: 1>, scalar_prefetch = 0 : i64, scratch_operands = 0 : i64, tpu.core_type = #tpu.core_type<tc>, window_params = [{transform_indices = @transform_0, window_bounds = array<i64: 16, 16>}, {pipeline_mode = #tpu.pipeline_mode<synchronous>, transform_indices = @transform_1, window_bounds = array<i64: 16, 32>}, {pipeline_mode = #tpu.pipeline_mode<synchronous>, transform_indices = @transform_2, window_bounds = array<i64: 1, 32>}, {pipeline_mode = #tpu.pipeline_mode<synchronous>, transform_indices = @transform_3, window_bounds = array<i64: 8, 32, 4>}, {pipeline_mode = #tpu.pipeline_mode<synchronous>, transform_indices = @transform_4, window_bounds = array<i64: 1, 4>}, {transform_indices = @transform_5, window_bounds = array<i64: 2, 4>}]} {
    %c0 = arith.constant 0 : index
    %c0_0 = arith.constant 0 : index
    %0 = vector.load %arg1[%c0, %c0_0] : memref<16x16xf32, #tpu.memory_space<vmem>>, vector<16x16xf32>
    %c0_1 = arith.constant 0 : index
    %c0_2 = arith.constant 0 : index
    %1 = vector.load %arg2[%c0_1, %c0_2] : memref<16x32xf32, #tpu.memory_space<vmem>>, vector<16x32xf32>
    %cst = arith.constant dense<0.000000e+00> : vector<16x32xf32>
    %2 = tpu.matmul %0, %1, %cst {dimension_numbers = #tpu.dot_dimension_numbers<[1], [0], [0], [1], [0, 0, 1, 1], [], []>} : vector<16x16xf32>, vector<16x32xf32>, vector<16x32xf32> -> vector<16x32xf32>
    %c0_3 = arith.constant 0 : index
    %c0_4 = arith.constant 0 : index
    %3 = vector.load %arg3[%c0_3, %c0_4] : memref<1x32xf32, #tpu.memory_space<vmem>>, vector<1x32xf32>
    %4 = vector.broadcast %3 : vector<1x32xf32> to vector<16x32xf32>
    %5 = arith.addf %2, %4 : vector<16x32xf32>
    %cst_5 = arith.constant 0.000000e+00 : f32
    %6 = vector.broadcast %cst_5 : f32 to vector<16x32xf32>
    %7 = arith.maximumf %5, %6 : vector<16x32xf32>
    %8 = vector.shape_cast %7 : vector<16x32xf32> to vector<2x8x32xf32>
    %c0_6 = arith.constant 0 : index
    %c0_7 = arith.constant 0 : index
    %c0_8 = arith.constant 0 : index
    %9 = vector.load %arg4[%c0_6, %c0_7, %c0_8] : memref<8x32x4xf32, #tpu.memory_space<vmem>>, vector<8x32x4xf32>
    %cst_9 = arith.constant 0.000000e+00 : f32
    %10 = vector.broadcast %cst_9 : f32 to vector<2x4xf32>
    %11 = vector.extract_strided_slice %8 {offsets = [0, 0, 0], sizes = [2, 1, 32], strides = [1, 1, 1]} : vector<2x8x32xf32> to vector<2x1x32xf32>
    %12 = vector.shape_cast %11 : vector<2x1x32xf32> to vector<2x32xf32>
    %13 = vector.extract_strided_slice %9 {offsets = [0, 0, 0], sizes = [1, 32, 4], strides = [1, 1, 1]} : vector<8x32x4xf32> to vector<1x32x4xf32>
    %14 = vector.shape_cast %13 : vector<1x32x4xf32> to vector<32x4xf32>
    %cst_10 = arith.constant dense<0.000000e+00> : vector<2x4xf32>
    %15 = tpu.matmul %12, %14, %cst_10 {dimension_numbers = #tpu.dot_dimension_numbers<[1], [0], [0], [1], [0, 0, 1, 1], [], []>} : vector<2x32xf32>, vector<32x4xf32>, vector<2x4xf32> -> vector<2x4xf32>
    %16 = arith.addf %10, %15 : vector<2x4xf32>
    %17 = vector.extract_strided_slice %8 {offsets = [0, 1, 0], sizes = [2, 1, 32], strides = [1, 1, 1]} : vector<2x8x32xf32> to vector<2x1x32xf32>
    %18 = vector.shape_cast %17 : vector<2x1x32xf32> to vector<2x32xf32>
    %19 = vector.extract_strided_slice %9 {offsets = [1, 0, 0], sizes = [1, 32, 4], strides = [1, 1, 1]} : vector<8x32x4xf32> to vector<1x32x4xf32>
    %20 = vector.shape_cast %19 : vector<1x32x4xf32> to vector<32x4xf32>
    %cst_11 = arith.constant dense<0.000000e+00> : vector<2x4xf32>
    %21 = tpu.matmul %18, %20, %cst_11 {dimension_numbers = #tpu.dot_dimension_numbers<[1], [0], [0], [1], [0, 0, 1, 1], [], []>} : vector<2x32xf32>, vector<32x4xf32>, vector<2x4xf32> -> vector<2x4xf32>
    %22 = arith.addf %16, %21 : vector<2x4xf32>
    %23 = vector.extract_strided_slice %8 {offsets = [0, 2, 0], sizes = [2, 1, 32], strides = [1, 1, 1]} : vector<2x8x32xf32> to vector<2x1x32xf32>
    %24 = vector.shape_cast %23 : vector<2x1x32xf32> to vector<2x32xf32>
    %25 = vector.extract_strided_slice %9 {offsets = [2, 0, 0], sizes = [1, 32, 4], strides = [1, 1, 1]} : vector<8x32x4xf32> to vector<1x32x4xf32>
    %26 = vector.shape_cast %25 : vector<1x32x4xf32> to vector<32x4xf32>
    %cst_12 = arith.constant dense<0.000000e+00> : vector<2x4xf32>
    %27 = tpu.matmul %24, %26, %cst_12 {dimension_numbers = #tpu.dot_dimension_numbers<[1], [0], [0], [1], [0, 0, 1, 1], [], []>} : vector<2x32xf32>, vector<32x4xf32>, vector<2x4xf32> -> vector<2x4xf32>
    %28 = arith.addf %22, %27 : vector<2x4xf32>
    %29 = vector.extract_strided_slice %8 {offsets = [0, 3, 0], sizes = [2, 1, 32], strides = [1, 1, 1]} : vector<2x8x32xf32> to vector<2x1x32xf32>
    %30 = vector.shape_cast %29 : vector<2x1x32xf32> to vector<2x32xf32>
    %31 = vector.extract_strided_slice %9 {offsets = [3, 0, 0], sizes = [1, 32, 4], strides = [1, 1, 1]} : vector<8x32x4xf32> to vector<1x32x4xf32>
    %32 = vector.shape_cast %31 : vector<1x32x4xf32> to vector<32x4xf32>
    %cst_13 = arith.constant dense<0.000000e+00> : vector<2x4xf32>
    %33 = tpu.matmul %30, %32, %cst_13 {dimension_numbers = #tpu.dot_dimension_numbers<[1], [0], [0], [1], [0, 0, 1, 1], [], []>} : vector<2x32xf32>, vector<32x4xf32>, vector<2x4xf32> -> vector<2x4xf32>
    %34 = arith.addf %28, %33 : vector<2x4xf32>
    %35 = vector.extract_strided_slice %8 {offsets = [0, 4, 0], sizes = [2, 1, 32], strides = [1, 1, 1]} : vector<2x8x32xf32> to vector<2x1x32xf32>
    %36 = vector.shape_cast %35 : vector<2x1x32xf32> to vector<2x32xf32>
    %37 = vector.extract_strided_slice %9 {offsets = [4, 0, 0], sizes = [1, 32, 4], strides = [1, 1, 1]} : vector<8x32x4xf32> to vector<1x32x4xf32>
    %38 = vector.shape_cast %37 : vector<1x32x4xf32> to vector<32x4xf32>
    %cst_14 = arith.constant dense<0.000000e+00> : vector<2x4xf32>
    %39 = tpu.matmul %36, %38, %cst_14 {dimension_numbers = #tpu.dot_dimension_numbers<[1], [0], [0], [1], [0, 0, 1, 1], [], []>} : vector<2x32xf32>, vector<32x4xf32>, vector<2x4xf32> -> vector<2x4xf32>
    %40 = arith.addf %34, %39 : vector<2x4xf32>
    %41 = vector.extract_strided_slice %8 {offsets = [0, 5, 0], sizes = [2, 1, 32], strides = [1, 1, 1]} : vector<2x8x32xf32> to vector<2x1x32xf32>
    %42 = vector.shape_cast %41 : vector<2x1x32xf32> to vector<2x32xf32>
    %43 = vector.extract_strided_slice %9 {offsets = [5, 0, 0], sizes = [1, 32, 4], strides = [1, 1, 1]} : vector<8x32x4xf32> to vector<1x32x4xf32>
    %44 = vector.shape_cast %43 : vector<1x32x4xf32> to vector<32x4xf32>
    %cst_15 = arith.constant dense<0.000000e+00> : vector<2x4xf32>
    %45 = tpu.matmul %42, %44, %cst_15 {dimension_numbers = #tpu.dot_dimension_numbers<[1], [0], [0], [1], [0, 0, 1, 1], [], []>} : vector<2x32xf32>, vector<32x4xf32>, vector<2x4xf32> -> vector<2x4xf32>
    %46 = arith.addf %40, %45 : vector<2x4xf32>
    %47 = vector.extract_strided_slice %8 {offsets = [0, 6, 0], sizes = [2, 1, 32], strides = [1, 1, 1]} : vector<2x8x32xf32> to vector<2x1x32xf32>
    %48 = vector.shape_cast %47 : vector<2x1x32xf32> to vector<2x32xf32>
    %49 = vector.extract_strided_slice %9 {offsets = [6, 0, 0], sizes = [1, 32, 4], strides = [1, 1, 1]} : vector<8x32x4xf32> to vector<1x32x4xf32>
    %50 = vector.shape_cast %49 : vector<1x32x4xf32> to vector<32x4xf32>
    %cst_16 = arith.constant dense<0.000000e+00> : vector<2x4xf32>
    %51 = tpu.matmul %48, %50, %cst_16 {dimension_numbers = #tpu.dot_dimension_numbers<[1], [0], [0], [1], [0, 0, 1, 1], [], []>} : vector<2x32xf32>, vector<32x4xf32>, vector<2x4xf32> -> vector<2x4xf32>
    %52 = arith.addf %46, %51 : vector<2x4xf32>
    %53 = vector.extract_strided_slice %8 {offsets = [0, 7, 0], sizes = [2, 1, 32], strides = [1, 1, 1]} : vector<2x8x32xf32> to vector<2x1x32xf32>
    %54 = vector.shape_cast %53 : vector<2x1x32xf32> to vector<2x32xf32>
    %55 = vector.extract_strided_slice %9 {offsets = [7, 0, 0], sizes = [1, 32, 4], strides = [1, 1, 1]} : vector<8x32x4xf32> to vector<1x32x4xf32>
    %56 = vector.shape_cast %55 : vector<1x32x4xf32> to vector<32x4xf32>
    %cst_17 = arith.constant dense<0.000000e+00> : vector<2x4xf32>
    %57 = tpu.matmul %54, %56, %cst_17 {dimension_numbers = #tpu.dot_dimension_numbers<[1], [0], [0], [1], [0, 0, 1, 1], [], []>} : vector<2x32xf32>, vector<32x4xf32>, vector<2x4xf32> -> vector<2x4xf32>
    %58 = arith.addf %52, %57 : vector<2x4xf32>
    %c0_18 = arith.constant 0 : index
    %c0_19 = arith.constant 0 : index
    %59 = vector.load %arg5[%c0_18, %c0_19] : memref<1x4xf32, #tpu.memory_space<vmem>>, vector<1x4xf32>
    %60 = vector.broadcast %59 : vector<1x4xf32> to vector<2x4xf32>
    %61 = arith.addf %58, %60 : vector<2x4xf32>
    %c0_20 = arith.constant 0 : index
    %c0_21 = arith.constant 0 : index
    %62 = vector.load %arg6[%c0_20, %c0_21] : memref<2x4xf32, #tpu.memory_space<vmem>>, vector<2x4xf32>
    tpu.vector_store %arg6[%c0_20, %c0_21], %61 {strides = array<i32>} : memref<2x4xf32, #tpu.memory_space<vmem>>, vector<2x4xf32>,
    return
  }
  func.func @transform_0(%arg0: i32) -> (i32, i32) {
    %c0_i32 = arith.constant 0 : i32
    %c0_i32_0 = arith.constant 0 : i32
    return %arg0, %c0_i32 : i32, i32
  }
  func.func @transform_1(%arg0: i32) -> (i32, i32) {
    %c0_i32 = arith.constant 0 : i32
    %c0_i32_0 = arith.constant 0 : i32
    %c0_i32_1 = arith.constant 0 : i32
    return %c0_i32, %c0_i32_0 : i32, i32
  }
  func.func @transform_2(%arg0: i32) -> (i32, i32) {
    %c0_i32 = arith.constant 0 : i32
    %c0_i32_0 = arith.constant 0 : i32
    %c0_i32_1 = arith.constant 0 : i32
    return %c0_i32, %c0_i32_0 : i32, i32
  }
  func.func @transform_3(%arg0: i32) -> (i32, i32, i32) {
    %c0_i32 = arith.constant 0 : i32
    %c0_i32_0 = arith.constant 0 : i32
    %c0_i32_1 = arith.constant 0 : i32
    %c0_i32_2 = arith.constant 0 : i32
    return %c0_i32, %c0_i32_0, %c0_i32_1 : i32, i32, i32
  }
  func.func @transform_4(%arg0: i32) -> (i32, i32) {
    %c0_i32 = arith.constant 0 : i32
    %c0_i32_0 = arith.constant 0 : i32
    %c0_i32_1 = arith.constant 0 : i32
    return %c0_i32, %c0_i32_0 : i32, i32
  }
  func.func @transform_5(%arg0: i32) -> (i32, i32) {
    %c0_i32 = arith.constant 0 : i32
    %c0_i32_0 = arith.constant 0 : i32
    return %arg0, %c0_i32 : i32, i32
  }
}

</mosaic_0001>

<llo_original>
// kernel: tpu_custom_call.1
$region0: #{tpu_custom_call.1}
  #allocation0 [shape = 'u32[]', space=smem, size = 0x4, offset = 0x4, fixed_abs, tag = 'smem constant byte address 0x4 - core index']
  #allocation1 [shape = 'u32[144,128]{1,0:T(1,128)}', space=vmem, size = 0x12000, scoped, tag = 'internal scratch']
  %s0 = inlined_call_operand.vmem [shape: f32[16,16], index: 0, kind: input, shape index: {}]
  %s1 = inlined_call_operand.vmem [shape: f32[16,32], index: 1, kind: input, shape index: {}]
  %s2 = inlined_call_operand.vmem [shape: f32[1,32], index: 2, kind: input, shape index: {}]
  %s3 = inlined_call_operand.vmem [shape: f32[8,32,4], index: 3, kind: input, shape index: {}]
  %s4 = inlined_call_operand.vmem [shape: f32[1,4], index: 4, kind: input, shape index: {}]
  %s5 = inlined_call_operand.hbm [shape: f32[2,4], index: 5, kind: output, shape index: {}]
  %s6 = sld [smem:[#allocation0]]
  $region30: #{tpu_custom_call.1} parent=0
    _
  %s8 = ssub.s32 1, %s6
  %s9 = scalar_select 0, %s8, %s6
  $region1: #{tpu_custom_call.1} parent=0
    #allocation2 [shape = 'u8[1024]{0}', space=vmem, size = 0x400, scoped, tag = 'output window, operand 0, single buffered']
    #allocation3 [shape = 's32[1]{0}', space=sflag, size = 0x4, scoped, tag = 'scoped memory for tpu_custom_call.1']
    %10 = vsyncpa [#allocation3], 0
    // Predicated region
    $region2: #{tpu_custom_call.1} parent=1 // pred_check
      _
    $region3: #{tpu_custom_call.1} parent=1 // pred_check_branch
      %12 = sbr.rel (0) target = $region5
    $region4: #{tpu_custom_call.1} parent=1 // pred_region
      _
    $region5: #{tpu_custom_call.1} parent=1 // pred_fallthru
      _
    // Predicated region
    $region6: #{tpu_custom_call.1} parent=1 // pred_check
      _
    $region7: #{tpu_custom_call.1} parent=1 // pred_check_branch
      %14 = sbr.rel (0) target = $region9
    $region8: #{tpu_custom_call.1} parent=1 // pred_region
      _
    $region9: #{tpu_custom_call.1} parent=1 // pred_fallthru
      _
    // Predicated region
    $region10: #{tpu_custom_call.1} parent=1 // pred_check
      _
    $region11: #{tpu_custom_call.1} parent=1 // pred_check_branch
      %16 = sbr.rel (0) target = $region13
    $region12: #{tpu_custom_call.1} parent=1 // pred_region
      _
    $region13: #{tpu_custom_call.1} parent=1 // pred_fallthru
      _
    // Predicated region
    $region14: #{tpu_custom_call.1} parent=1 // pred_check
      _
    $region15: #{tpu_custom_call.1} parent=1 // pred_check_branch
      %18 = sbr.rel (0) target = $region17
    $region16: #{tpu_custom_call.1} parent=1 // pred_region
      _
    $region17: #{tpu_custom_call.1} parent=1 // pred_fallthru
      _
    // Predicated region
    $region18: #{tpu_custom_call.1} parent=1 // pred_check
      _
    $region19: #{tpu_custom_call.1} parent=1 // pred_check_branch
      %20 = sbr.rel (0) target = $region21
    $region20: #{tpu_custom_call.1} parent=1 // pred_region
      _
    $region21: #{tpu_custom_call.1} parent=1 // pred_fallthru
      _
    %v21 = vld [vmem:[%s0] sm:$0xff]
    %v22 = vld [vmem:[%s0 + $0x8] sm:$0xff]
    %v23 = vld [vmem:[%s1] sm:$0xff]
    %v24 = vld [vmem:[%s1 + $0x8] sm:$0xff]
    %v25 = vld [vmem:[%s2] sm:$0x1]
    %v27 = vlaneseq
    %v28 = vshrl.u32 %v27, 7
    %v29 = vsub.s32 0, %v28
    %v30 = vrot.slane %v25, %v29
    %vm32 = vcmask 130048
    %v34 = vsel %vm32, %v21, 0
    %v37 = vsel %vm32, %v22, 0
    %39 = vmatprep.subr.mxu0 0.0
    %40 = vmatpush1.msra.mxu0 %v23
    %41 = vmatprep.subr.mxu0 0.0
    %42 = vmatpush1.msra.mxu0 %v24
    %43 = vmatprep.subr.mxu0 0.0
    %44 = vmatpush1.msra.mxu0 0.0
    %45 = vmatprep.subr.mxu0 0.0
    %46 = vmatpush1.msra.mxu0 0.0
    %47 = vmatprep.subr.mxu0 0.0
    %48 = vmatpush1.msra.mxu0 0.0
    %49 = vmatprep.subr.mxu0 0.0
    %50 = vmatpush1.msra.mxu0 0.0
    %51 = vmatprep.subr.mxu0 0.0
    %52 = vmatpush1.msra.mxu0 0.0
    %53 = vmatprep.subr.mxu0 0.0
    %54 = vmatpush1.msra.mxu0 0.0
    %55 = vmatprep.subr.mxu0 0.0
    %56 = vmatpush1.msra.mxu0 0.0
    %57 = vmatprep.subr.mxu0 0.0
    %58 = vmatpush1.msra.mxu0 0.0
    %59 = vmatprep.subr.mxu0 0.0
    %60 = vmatpush1.msra.mxu0 0.0
    %61 = vmatprep.subr.mxu0 0.0
    %62 = vmatpush1.msra.mxu0 0.0
    %63 = vmatprep.subr.mxu0 0.0
    %64 = vmatpush1.msra.mxu0 0.0
    %65 = vmatprep.subr.mxu0 0.0
    %66 = vmatpush1.msra.mxu0 0.0
    %67 = vmatprep.subr.mxu0 0.0
    %68 = vmatpush1.msra.mxu0 0.0
    %69 = vmatprep.subr.mxu0 0.0
    %70 = vmatpush1.msra.mxu0 0.0
    %71 = vmatprep.subr.mxu0 0.0
    %72 = vmatpush1.msra.mxu0 0.0
    %73 = vmatprep.subr.mxu0 0.0
    %74 = vmatpush1.msra.mxu0 0.0
    %75 = vmatprep.subr.mxu0 0.0
    %76 = vmatpush1.msra.mxu0 0.0
    %77 = vmatprep.subr.mxu0 0.0
    %78 = vmatpush1.msra.mxu0 0.0
    %79 = vmatprep.subr.mxu0 0.0
    %80 = vmatpush1.msra.mxu0 0.0
    %81 = vmatprep.subr.mxu0 0.0
    %82 = vmatpush1.msra.mxu0 0.0
    %83 = vmatprep.subr.mxu0 0.0
    %84 = vmatpush1.msra.mxu0 0.0
    %85 = vmatprep.subr.mxu0 0.0
    %86 = vmatpush1.msra.mxu0 0.0
    %87 = vmatprep.subr.mxu0 0.0
    %88 = vmatpush1.msra.mxu0 0.0
    %89 = vmatprep.subr.mxu0 0.0
    %90 = vmatpush1.msra.mxu0 0.0
    %91 = vmatprep.subr.mxu0 0.0
    %92 = vmatpush1.msra.mxu0 0.0
    %93 = vmatprep.subr.mxu0 0.0
    %94 = vmatpush1.msra.mxu0 0.0
    %95 = vmatprep.subr.mxu0 0.0
    %96 = vmatpush1.msra.mxu0 0.0
    %97 = vmatprep.subr.mxu0 0.0
    %98 = vmatpush1.msra.mxu0 0.0
    %99 = vmatprep.subr.mxu0 0.0
    %100 = vmatpush1.msra.mxu0 0.0
    %101 = vmatprep.subr.mxu0 0.0
    %102 = vmatpush1.msra.mxu0 0.0
    %103 = vmatprep.mubr.f32.mxu0 0.0
    %104 = vmatmul.mubr.f32.gmra.mrb[0].mxu0 %v34
    %v105 = vpop.f32.mrb[0].mxu0
    %v106 = vadd.f32 %v30, %v105
    %v107 = vpop.f32.mrb[0].mxu0
    %108 = vmatprep.mubr.f32.mxu0 0.0
    %109 = vmatmul.mubr.f32.gmra.mrb[0].mxu0 %v37
    %v110 = vpop.f32.mrb[0].mxu0
    %v111 = vadd.f32 %v30, %v110
    %v112 = vpop.f32.mrb[0].mxu0
    %113 = vdwg.mxu0
    %v114 = vmax.f32 %v106, 0.0
    %v115 = vmax.f32 %v111, 0.0
    %v116 = vld [vmem:[%s3] sm:$0xff]
    %v117 = vld [vmem:[%s3 + $0x8] sm:$0xff]
    %v118 = vld [vmem:[%s3 + $0x10] sm:$0xff]
    %v119 = vld [vmem:[%s3 + $0x18] sm:$0xff]
    %v120 = vld [vmem:[%s3 + $0x20] sm:$0xff]
    %v121 = vld [vmem:[%s3 + $0x28] sm:$0xff]
    %v122 = vld [vmem:[%s3 + $0x30] sm:$0xff]
    %v123 = vld [vmem:[%s3 + $0x38] sm:$0xff]
    %v124 = vld [vmem:[%s3 + $0x40] sm:$0xff]
    %v125 = vld [vmem:[%s3 + $0x48] sm:$0xff]
    %v126 = vld [vmem:[%s3 + $0x50] sm:$0xff]
    %v127 = vld [vmem:[%s3 + $0x58] sm:$0xff]
    %v128 = vld [vmem:[%s3 + $0x60] sm:$0xff]
    %v129 = vld [vmem:[%s3 + $0x68] sm:$0xff]
    %v130 = vld [vmem:[%s3 + $0x70] sm:$0xff]
    %v131 = vld [vmem:[%s3 + $0x78] sm:$0xff]
    %v132 = vld [vmem:[%s3 + $0x80] sm:$0xff]
    %v133 = vld [vmem:[%s3 + $0x88] sm:$0xff]
    %v134 = vld [vmem:[%s3 + $0x90] sm:$0xff]
    %v135 = vld [vmem:[%s3 + $0x98] sm:$0xff]
    %v136 = vld [vmem:[%s3 + $0xa0] sm:$0xff]
    %v137 = vld [vmem:[%s3 + $0xa8] sm:$0xff]
    %v138 = vld [vmem:[%s3 + $0xb0] sm:$0xff]
    %v139 = vld [vmem:[%s3 + $0xb8] sm:$0xff]
    %v140 = vld [vmem:[%s3 + $0xc0] sm:$0xff]
    %v141 = vld [vmem:[%s3 + $0xc8] sm:$0xff]
    %v142 = vld [vmem:[%s3 + $0xd0] sm:$0xff]
    %v143 = vld [vmem:[%s3 + $0xd8] sm:$0xff]
    %v144 = vld [vmem:[%s3 + $0xe0] sm:$0xff]
    %v145 = vld [vmem:[%s3 + $0xe8] sm:$0xff]
    %v146 = vld [vmem:[%s3 + $0xf0] sm:$0xff]
    %v147 = vld [vmem:[%s3 + $0xf8] sm:$0xff]
    %v150 = vrot.slane %v114, 1
    %vm151 = vcmask 1041409
    %v152 = vsel %vm151, %v115, %v150
    %vm153 = vcmask 261120
    %v154 = vsel %vm153, %v152, 0
    %156 = vmatprep.subr.mxu0 0.0
    %157 = vmatpush1.msra.mxu0 %v120
    %158 = vmatprep.subr.mxu0 0.0
    %159 = vmatpush1.msra.mxu0 %v121
    %160 = vmatprep.subr.mxu0 0.0
    %161 = vmatpush1.msra.mxu0 %v122
    %162 = vmatprep.subr.mxu0 0.0
    %163 = vmatpush1.msra.mxu0 %v123
    %164 = vmatprep.subr.mxu0 0.0
    %165 = vmatpush1.msra.mxu0 0.0
    %166 = vmatprep.subr.mxu0 0.0
    %167 = vmatpush1.msra.mxu0 0.0
    %168 = vmatprep.subr.mxu0 0.0
    %169 = vmatpush1.msra.mxu0 0.0
    %170 = vmatprep.subr.mxu0 0.0
    %171 = vmatpush1.msra.mxu0 0.0
    %172 = vmatprep.subr.mxu0 0.0
    %173 = vmatpush1.msra.mxu0 0.0
    %174 = vmatprep.subr.mxu0 0.0
    %175 = vmatpush1.msra.mxu0 0.0
    %176 = vmatprep.subr.mxu0 0.0
    %177 = vmatpush1.msra.mxu0 0.0
    %178 = vmatprep.subr.mxu0 0.0
    %179 = vmatpush1.msra.mxu0 0.0
    %180 = vmatprep.subr.mxu0 0.0
    %181 = vmatpush1.msra.mxu0 0.0
    %182 = vmatprep.subr.mxu0 0.0
    %183 = vmatpush1.msra.mxu0 0.0
    %184 = vmatprep.subr.mxu0 0.0
    %185 = vmatpush1.msra.mxu0 0.0
    %186 = vmatprep.subr.mxu0 0.0
    %187 = vmatpush1.msra.mxu0 0.0
    %188 = vmatprep.subr.mxu0 0.0
    %189 = vmatpush1.msra.mxu0 0.0
    %190 = vmatprep.subr.mxu0 0.0
    %191 = vmatpush1.msra.mxu0 0.0
    %192 = vmatprep.subr.mxu0 0.0
    %193 = vmatpush1.msra.mxu0 0.0
    %194 = vmatprep.subr.mxu0 0.0
    %195 = vmatpush1.msra.mxu0 0.0
    %196 = vmatprep.subr.mxu0 0.0
    %197 = vmatpush1.msra.mxu0 0.0
    %198 = vmatprep.subr.mxu0 0.0
    %199 = vmatpush1.msra.mxu0 0.0
    %200 = vmatprep.subr.mxu0 0.0
    %201 = vmatpush1.msra.mxu0 0.0
    %202 = vmatprep.subr.mxu0 0.0
    %203 = vmatpush1.msra.mxu0 0.0
    %204 = vmatprep.subr.mxu0 0.0
    %205 = vmatpush1.msra.mxu0 0.0
    %206 = vmatprep.subr.mxu0 0.0
    %207 = vmatpush1.msra.mxu0 0.0
    %208 = vmatprep.subr.mxu0 0.0
    %209 = vmatpush1.msra.mxu0 0.0
    %210 = vmatprep.subr.mxu0 0.0
    %211 = vmatpush1.msra.mxu0 0.0
    %212 = vmatprep.subr.mxu0 0.0
    %213 = vmatpush1.msra.mxu0 0.0
    %214 = vmatprep.subr.mxu0 0.0
    %215 = vmatpush1.msra.mxu0 0.0
    %216 = vmatprep.subr.mxu0 0.0
    %217 = vmatpush1.msra.mxu0 0.0
    %218 = vmatprep.subr.mxu0 0.0
    %219 = vmatpush1.msra.mxu0 0.0
    %220 = vmatprep.mubr.f32.mxu0 0.0
    %221 = vmatmul.mubr.f32.gmra.mrb[0].mxu0 %v154
    %v222 = vpop.f32.mrb[0].mxu0
    %v223 = vadd.f32 0.0, %v222
    %v224 = vpop.f32.mrb[0].mxu0
    %225 = vdwg.mxu0
    %v226 = vrot.slane %v115, 7
    %v227 = vsel %vm151, %v226, %v114
    %v228 = vsel %vm153, %v227, 0
    %230 = vmatprep.subr.mxu0 0.0
    %231 = vmatpush1.msra.mxu0 %v116
    %232 = vmatprep.subr.mxu0 0.0
    %233 = vmatpush1.msra.mxu0 %v117
    %234 = vmatprep.subr.mxu0 0.0
    %235 = vmatpush1.msra.mxu0 %v118
    %236 = vmatprep.subr.mxu0 0.0
    %237 = vmatpush1.msra.mxu0 %v119
    %238 = vmatprep.subr.mxu0 0.0
    %239 = vmatpush1.msra.mxu0 0.0
    %240 = vmatprep.subr.mxu0 0.0
    %241 = vmatpush1.msra.mxu0 0.0
    %242 = vmatprep.subr.mxu0 0.0
    %243 = vmatpush1.msra.mxu0 0.0
    %244 = vmatprep.subr.mxu0 0.0
    %245 = vmatpush1.msra.mxu0 0.0
    %246 = vmatprep.subr.mxu0 0.0
    %247 = vmatpush1.msra.mxu0 0.0
    %248 = vmatprep.subr.mxu0 0.0
    %249 = vmatpush1.msra.mxu0 0.0
    %250 = vmatprep.subr.mxu0 0.0
    %251 = vmatpush1.msra.mxu0 0.0
    %252 = vmatprep.subr.mxu0 0.0
    %253 = vmatpush1.msra.mxu0 0.0
    %254 = vmatprep.subr.mxu0 0.0
    %255 = vmatpush1.msra.mxu0 0.0
    %256 = vmatprep.subr.mxu0 0.0
    %257 = vmatpush1.msra.mxu0 0.0
    %258 = vmatprep.subr.mxu0 0.0
    %259 = vmatpush1.msra.mxu0 0.0
    %260 = vmatprep.subr.mxu0 0.0
    %261 = vmatpush1.msra.mxu0 0.0
    %262 = vmatprep.subr.mxu0 0.0
    %263 = vmatpush1.msra.mxu0 0.0
    %264 = vmatprep.subr.mxu0 0.0
    %265 = vmatpush1.msra.mxu0 0.0
    %266 = vmatprep.subr.mxu0 0.0
    %267 = vmatpush1.msra.mxu0 0.0
    %268 = vmatprep.subr.mxu0 0.0
    %269 = vmatpush1.msra.mxu0 0.0
    %270 = vmatprep.subr.mxu0 0.0
    %271 = vmatpush1.msra.mxu0 0.0
    %272 = vmatprep.subr.mxu0 0.0
    %273 = vmatpush1.msra.mxu0 0.0
    %274 = vmatprep.subr.mxu0 0.0
    %275 = vmatpush1.msra.mxu0 0.0
    %276 = vmatprep.subr.mxu0 0.0
    %277 = vmatpush1.msra.mxu0 0.0
    %278 = vmatprep.subr.mxu0 0.0
    %279 = vmatpush1.msra.mxu0 0.0
    %280 = vmatprep.subr.mxu0 0.0
    %281 = vmatpush1.msra.mxu0 0.0
    %282 = vmatprep.subr.mxu0 0.0
    %283 = vmatpush1.msra.mxu0 0.0
    %284 = vmatprep.subr.mxu0 0.0
    %285 = vmatpush1.msra.mxu0 0.0
    %286 = vmatprep.subr.mxu0 0.0
    %287 = vmatpush1.msra.mxu0 0.0
    %288 = vmatprep.subr.mxu0 0.0
    %289 = vmatpush1.msra.mxu0 0.0
    %290 = vmatprep.subr.mxu0 0.0
    %291 = vmatpush1.msra.mxu0 0.0
    %292 = vmatprep.subr.mxu0 0.0
    %293 = vmatpush1.msra.mxu0 0.0
    %294 = vmatprep.mubr.f32.mxu0 0.0
    %295 = vmatmul.mubr.f32.gmra.mrb[0].mxu0 %v228
    %v296 = vpop.f32.mrb[0].mxu0
    %v297 = vadd.f32 %v223, %v296
    %v298 = vpop.f32.mrb[0].mxu0
    %299 = vdwg.mxu0
    %v300 = vrot.slane %v114, 2
    %v301 = vrot.slane %v115, 1
    %v302 = vsel %vm151, %v301, %v300
    %v303 = vsel %vm153, %v302, 0
    %305 = vmatprep.subr.mxu0 0.0
    %306 = vmatpush1.msra.mxu0 %v124
    %307 = vmatprep.subr.mxu0 0.0
    %308 = vmatpush1.msra.mxu0 %v125
    %309 = vmatprep.subr.mxu0 0.0
    %310 = vmatpush1.msra.mxu0 %v126
    %311 = vmatprep.subr.mxu0 0.0
    %312 = vmatpush1.msra.mxu0 %v127
    %313 = vmatprep.subr.mxu0 0.0
    %314 = vmatpush1.msra.mxu0 0.0
    %315 = vmatprep.subr.mxu0 0.0
    %316 = vmatpush1.msra.mxu0 0.0
    %317 = vmatprep.subr.mxu0 0.0
    %318 = vmatpush1.msra.mxu0 0.0
    %319 = vmatprep.subr.mxu0 0.0
    %320 = vmatpush1.msra.mxu0 0.0
    %321 = vmatprep.subr.mxu0 0.0
    %322 = vmatpush1.msra.mxu0 0.0
    %323 = vmatprep.subr.mxu0 0.0
    %324 = vmatpush1.msra.mxu0 0.0
    %325 = vmatprep.subr.mxu0 0.0
    %326 = vmatpush1.msra.mxu0 0.0
    %327 = vmatprep.subr.mxu0 0.0
    %328 = vmatpush1.msra.mxu0 0.0
    %329 = vmatprep.subr.mxu0 0.0
    %330 = vmatpush1.msra.mxu0 0.0
    %331 = vmatprep.subr.mxu0 0.0
    %332 = vmatpush1.msra.mxu0 0.0
    %333 = vmatprep.subr.mxu0 0.0
    %334 = vmatpush1.msra.mxu0 0.0
    %335 = vmatprep.subr.mxu0 0.0
    %336 = vmatpush1.msra.mxu0 0.0
    %337 = vmatprep.subr.mxu0 0.0
    %338 = vmatpush1.msra.mxu0 0.0
    %339 = vmatprep.subr.mxu0 0.0
    %340 = vmatpush1.msra.mxu0 0.0
    %341 = vmatprep.subr.mxu0 0.0
    %342 = vmatpush1.msra.mxu0 0.0
    %343 = vmatprep.subr.mxu0 0.0
    %344 = vmatpush1.msra.mxu0 0.0
    %345 = vmatprep.subr.mxu0 0.0
    %346 = vmatpush1.msra.mxu0 0.0
    %347 = vmatprep.subr.mxu0 0.0
    %348 = vmatpush1.msra.mxu0 0.0
    %349 = vmatprep.subr.mxu0 0.0
    %350 = vmatpush1.msra.mxu0 0.0
    %351 = vmatprep.subr.mxu0 0.0
    %352 = vmatpush1.msra.mxu0 0.0
    %353 = vmatprep.subr.mxu0 0.0
    %354 = vmatpush1.msra.mxu0 0.0
    %355 = vmatprep.subr.mxu0 0.0
    %356 = vmatpush1.msra.mxu0 0.0
    %357 = vmatprep.subr.mxu0 0.0
    %358 = vmatpush1.msra.mxu0 0.0
    %359 = vmatprep.subr.mxu0 0.0
    %360 = vmatpush1.msra.mxu0 0.0
    %361 = vmatprep.subr.mxu0 0.0
    %362 = vmatpush1.msra.mxu0 0.0
    %363 = vmatprep.subr.mxu0 0.0
    %364 = vmatpush1.msra.mxu0 0.0
    %365 = vmatprep.subr.mxu0 0.0
    %366 = vmatpush1.msra.mxu0 0.0
    %367 = vmatprep.subr.mxu0 0.0
    %368 = vmatpush1.msra.mxu0 0.0
    %369 = vmatprep.mubr.f32.mxu0 0.0
    %370 = vmatmul.mubr.f32.gmra.mrb[0].mxu0 %v303
    %v371 = vpop.f32.mrb[0].mxu0
    %v372 = vadd.f32 0.0, %v371
    %v373 = vpop.f32.mrb[0].mxu0
    %374 = vdwg.mxu0
    %v375 = vadd.f32 %v297, %v372
    %v376 = vrot.slane %v114, 3
    %v377 = vrot.slane %v115, 2
    %v378 = vsel %vm151, %v377, %v376
    %v379 = vsel %vm153, %v378, 0
    %381 = vmatprep.subr.mxu0 0.0
    %382 = vmatpush1.msra.mxu0 %v128
    %383 = vmatprep.subr.mxu0 0.0
    %384 = vmatpush1.msra.mxu0 %v129
    %385 = vmatprep.subr.mxu0 0.0
    %386 = vmatpush1.msra.mxu0 %v130
    %387 = vmatprep.subr.mxu0 0.0
    %388 = vmatpush1.msra.mxu0 %v131
    %389 = vmatprep.subr.mxu0 0.0
    %390 = vmatpush1.msra.mxu0 0.0
    %391 = vmatprep.subr.mxu0 0.0
    %392 = vmatpush1.msra.mxu0 0.0
    %393 = vmatprep.subr.mxu0 0.0
    %394 = vmatpush1.msra.mxu0 0.0
    %395 = vmatprep.subr.mxu0 0.0
    %396 = vmatpush1.msra.mxu0 0.0
    %397 = vmatprep.subr.mxu0 0.0
    %398 = vmatpush1.msra.mxu0 0.0
    %399 = vmatprep.subr.mxu0 0.0
    %400 = vmatpush1.msra.mxu0 0.0
    %401 = vmatprep.subr.mxu0 0.0
    %402 = vmatpush1.msra.mxu0 0.0
    %403 = vmatprep.subr.mxu0 0.0
    %404 = vmatpush1.msra.mxu0 0.0
    %405 = vmatprep.subr.mxu0 0.0
    %406 = vmatpush1.msra.mxu0 0.0
    %407 = vmatprep.subr.mxu0 0.0
    %408 = vmatpush1.msra.mxu0 0.0
    %409 = vmatprep.subr.mxu0 0.0
    %410 = vmatpush1.msra.mxu0 0.0
    %411 = vmatprep.subr.mxu0 0.0
    %412 = vmatpush1.msra.mxu0 0.0
    %413 = vmatprep.subr.mxu0 0.0
    %414 = vmatpush1.msra.mxu0 0.0
    %415 = vmatprep.subr.mxu0 0.0
    %416 = vmatpush1.msra.mxu0 0.0
    %417 = vmatprep.subr.mxu0 0.0
    %418 = vmatpush1.msra.mxu0 0.0
    %419 = vmatprep.subr.mxu0 0.0
    %420 = vmatpush1.msra.mxu0 0.0
    %421 = vmatprep.subr.mxu0 0.0
    %422 = vmatpush1.msra.mxu0 0.0
    %423 = vmatprep.subr.mxu0 0.0
    %424 = vmatpush1.msra.mxu0 0.0
    %425 = vmatprep.subr.mxu0 0.0
    %426 = vmatpush1.msra.mxu0 0.0
    %427 = vmatprep.subr.mxu0 0.0
    %428 = vmatpush1.msra.mxu0 0.0
    %429 = vmatprep.subr.mxu0 0.0
    %430 = vmatpush1.msra.mxu0 0.0
    %431 = vmatprep.subr.mxu0 0.0
    %432 = vmatpush1.msra.mxu0 0.0
    %433 = vmatprep.subr.mxu0 0.0
    %434 = vmatpush1.msra.mxu0 0.0
    %435 = vmatprep.subr.mxu0 0.0
    %436 = vmatpush1.msra.mxu0 0.0
    %437 = vmatprep.subr.mxu0 0.0
    %438 = vmatpush1.msra.mxu0 0.0
    %439 = vmatprep.subr.mxu0 0.0
    %440 = vmatpush1.msra.mxu0 0.0
    %441 = vmatprep.subr.mxu0 0.0
    %442 = vmatpush1.msra.mxu0 0.0
    %443 = vmatprep.subr.mxu0 0.0
    %444 = vmatpush1.msra.mxu0 0.0
    %445 = vmatprep.mubr.f32.mxu0 0.0
    %446 = vmatmul.mubr.f32.gmra.mrb[0].mxu0 %v379
    %v447 = vpop.f32.mrb[0].mxu0
    %v448 = vadd.f32 0.0, %v447
    %v449 = vpop.f32.mrb[0].mxu0
    %450 = vdwg.mxu0
    %v451 = vadd.f32 %v375, %v448
    %v452 = vrot.slane %v114, 4
    %v453 = vrot.slane %v115, 3
    %v454 = vsel %vm151, %v453, %v452
    %v455 = vsel %vm153, %v454, 0
    %457 = vmatprep.subr.mxu0 0.0
    %458 = vmatpush1.msra.mxu0 %v132
    %459 = vmatprep.subr.mxu0 0.0
    %460 = vmatpush1.msra.mxu0 %v133
    %461 = vmatprep.subr.mxu0 0.0
    %462 = vmatpush1.msra.mxu0 %v134
    %463 = vmatprep.subr.mxu0 0.0
    %464 = vmatpush1.msra.mxu0 %v135
    %465 = vmatprep.subr.mxu0 0.0
    %466 = vmatpush1.msra.mxu0 0.0
    %467 = vmatprep.subr.mxu0 0.0
    %468 = vmatpush1.msra.mxu0 0.0
    %469 = vmatprep.subr.mxu0 0.0
    %470 = vmatpush1.msra.mxu0 0.0
    %471 = vmatprep.subr.mxu0 0.0
    %472 = vmatpush1.msra.mxu0 0.0
    %473 = vmatprep.subr.mxu0 0.0
    %474 = vmatpush1.msra.mxu0 0.0
    %475 = vmatprep.subr.mxu0 0.0
    %476 = vmatpush1.msra.mxu0 0.0
    %477 = vmatprep.subr.mxu0 0.0
    %478 = vmatpush1.msra.mxu0 0.0
    %479 = vmatprep.subr.mxu0 0.0
    %480 = vmatpush1.msra.mxu0 0.0
    %481 = vmatprep.subr.mxu0 0.0
    %482 = vmatpush1.msra.mxu0 0.0
    %483 = vmatprep.subr.mxu0 0.0
    %484 = vmatpush1.msra.mxu0 0.0
    %485 = vmatprep.subr.mxu0 0.0
    %486 = vmatpush1.msra.mxu0 0.0
    %487 = vmatprep.subr.mxu0 0.0
    %488 = vmatpush1.msra.mxu0 0.0
    %489 = vmatprep.subr.mxu0 0.0
    %490 = vmatpush1.msra.mxu0 0.0
    %491 = vmatprep.subr.mxu0 0.0
    %492 = vmatpush1.msra.mxu0 0.0
    %493 = vmatprep.subr.mxu0 0.0
    %494 = vmatpush1.msra.mxu0 0.0
    %495 = vmatprep.subr.mxu0 0.0
    %496 = vmatpush1.msra.mxu0 0.0
    %497 = vmatprep.subr.mxu0 0.0
    %498 = vmatpush1.msra.mxu0 0.0
    %499 = vmatprep.subr.mxu0 0.0
    %500 = vmatpush1.msra.mxu0 0.0
    %501 = vmatprep.subr.mxu0 0.0
    %502 = vmatpush1.msra.mxu0 0.0
    %503 = vmatprep.subr.mxu0 0.0
    %504 = vmatpush1.msra.mxu0 0.0
    %505 = vmatprep.subr.mxu0 0.0
    %506 = vmatpush1.msra.mxu0 0.0
    %507 = vmatprep.subr.mxu0 0.0
    %508 = vmatpush1.msra.mxu0 0.0
    %509 = vmatprep.subr.mxu0 0.0
    %510 = vmatpush1.msra.mxu0 0.0
    %511 = vmatprep.subr.mxu0 0.0
    %512 = vmatpush1.msra.mxu0 0.0
    %513 = vmatprep.subr.mxu0 0.0
    %514 = vmatpush1.msra.mxu0 0.0
    %515 = vmatprep.subr.mxu0 0.0
    %516 = vmatpush1.msra.mxu0 0.0
    %517 = vmatprep.subr.mxu0 0.0
    %518 = vmatpush1.msra.mxu0 0.0
    %519 = vmatprep.subr.mxu0 0.0
    %520 = vmatpush1.msra.mxu0 0.0
    %521 = vmatprep.mubr.f32.mxu0 0.0
    %522 = vmatmul.mubr.f32.gmra.mrb[0].mxu0 %v455
    %v523 = vpop.f32.mrb[0].mxu0
    %v524 = vadd.f32 0.0, %v523
    %v525 = vpop.f32.mrb[0].mxu0
    %526 = vdwg.mxu0
    %v527 = vadd.f32 %v451, %v524
    %v528 = vrot.slane %v114, 5
    %v529 = vrot.slane %v115, 4
    %v530 = vsel %vm151, %v529, %v528
    %v531 = vsel %vm153, %v530, 0
    %533 = vmatprep.subr.mxu0 0.0
    %534 = vmatpush1.msra.mxu0 %v136
    %535 = vmatprep.subr.mxu0 0.0
    %536 = vmatpush1.msra.mxu0 %v137
    %537 = vmatprep.subr.mxu0 0.0
    %538 = vmatpush1.msra.mxu0 %v138
    %539 = vmatprep.subr.mxu0 0.0
    %540 = vmatpush1.msra.mxu0 %v139
    %541 = vmatprep.subr.mxu0 0.0
    %542 = vmatpush1.msra.mxu0 0.0
    %543 = vmatprep.subr.mxu0 0.0
    %544 = vmatpush1.msra.mxu0 0.0
    %545 = vmatprep.subr.mxu0 0.0
    %546 = vmatpush1.msra.mxu0 0.0
    %547 = vmatprep.subr.mxu0 0.0
    %548 = vmatpush1.msra.mxu0 0.0
    %549 = vmatprep.subr.mxu0 0.0
    %550 = vmatpush1.msra.mxu0 0.0
    %551 = vmatprep.subr.mxu0 0.0
    %552 = vmatpush1.msra.mxu0 0.0
    %553 = vmatprep.subr.mxu0 0.0
    %554 = vmatpush1.msra.mxu0 0.0
    %555 = vmatprep.subr.mxu0 0.0
    %556 = vmatpush1.msra.mxu0 0.0
    %557 = vmatprep.subr.mxu0 0.0
    %558 = vmatpush1.msra.mxu0 0.0
    %559 = vmatprep.subr.mxu0 0.0
    %560 = vmatpush1.msra.mxu0 0.0
    %561 = vmatprep.subr.mxu0 0.0
    %562 = vmatpush1.msra.mxu0 0.0
    %563 = vmatprep.subr.mxu0 0.0
    %564 = vmatpush1.msra.mxu0 0.0
    %565 = vmatprep.subr.mxu0 0.0
    %566 = vmatpush1.msra.mxu0 0.0
    %567 = vmatprep.subr.mxu0 0.0
    %568 = vmatpush1.msra.mxu0 0.0
    %569 = vmatprep.subr.mxu0 0.0
    %570 = vmatpush1.msra.mxu0 0.0
    %571 = vmatprep.subr.mxu0 0.0
    %572 = vmatpush1.msra.mxu0 0.0
    %573 = vmatprep.subr.mxu0 0.0
    %574 = vmatpush1.msra.mxu0 0.0
    %575 = vmatprep.subr.mxu0 0.0
    %576 = vmatpush1.msra.mxu0 0.0
    %577 = vmatprep.subr.mxu0 0.0
    %578 = vmatpush1.msra.mxu0 0.0
    %579 = vmatprep.subr.mxu0 0.0
    %580 = vmatpush1.msra.mxu0 0.0
    %581 = vmatprep.subr.mxu0 0.0
    %582 = vmatpush1.msra.mxu0 0.0
    %583 = vmatprep.subr.mxu0 0.0
    %584 = vmatpush1.msra.mxu0 0.0
    %585 = vmatprep.subr.mxu0 0.0
    %586 = vmatpush1.msra.mxu0 0.0
    %587 = vmatprep.subr.mxu0 0.0
    %588 = vmatpush1.msra.mxu0 0.0
    %589 = vmatprep.subr.mxu0 0.0
    %590 = vmatpush1.msra.mxu0 0.0
    %591 = vmatprep.subr.mxu0 0.0
    %592 = vmatpush1.msra.mxu0 0.0
    %593 = vmatprep.subr.mxu0 0.0
    %594 = vmatpush1.msra.mxu0 0.0
    %595 = vmatprep.subr.mxu0 0.0
    %596 = vmatpush1.msra.mxu0 0.0
    %597 = vmatprep.mubr.f32.mxu0 0.0
    %598 = vmatmul.mubr.f32.gmra.mrb[0].mxu0 %v531
    %v599 = vpop.f32.mrb[0].mxu0
    %v600 = vadd.f32 0.0, %v599
    %v601 = vpop.f32.mrb[0].mxu0
    %602 = vdwg.mxu0
    %v603 = vadd.f32 %v527, %v600
    %v604 = vrot.slane %v114, 6
    %v605 = vrot.slane %v115, 5
    %v606 = vsel %vm151, %v605, %v604
    %v607 = vsel %vm153, %v606, 0
    %609 = vmatprep.subr.mxu0 0.0
    %610 = vmatpush1.msra.mxu0 %v140
    %611 = vmatprep.subr.mxu0 0.0
    %612 = vmatpush1.msra.mxu0 %v141
    %613 = vmatprep.subr.mxu0 0.0
    %614 = vmatpush1.msra.mxu0 %v142
    %615 = vmatprep.subr.mxu0 0.0
    %616 = vmatpush1.msra.mxu0 %v143
    %617 = vmatprep.subr.mxu0 0.0
    %618 = vmatpush1.msra.mxu0 0.0
    %619 = vmatprep.subr.mxu0 0.0
    %620 = vmatpush1.msra.mxu0 0.0
    %621 = vmatprep.subr.mxu0 0.0
    %622 = vmatpush1.msra.mxu0 0.0
    %623 = vmatprep.subr.mxu0 0.0
    %624 = vmatpush1.msra.mxu0 0.0
    %625 = vmatprep.subr.mxu0 0.0
    %626 = vmatpush1.msra.mxu0 0.0
    %627 = vmatprep.subr.mxu0 0.0
    %628 = vmatpush1.msra.mxu0 0.0
    %629 = vmatprep.subr.mxu0 0.0
    %630 = vmatpush1.msra.mxu0 0.0
    %631 = vmatprep.subr.mxu0 0.0
    %632 = vmatpush1.msra.mxu0 0.0
    %633 = vmatprep.subr.mxu0 0.0
    %634 = vmatpush1.msra.mxu0 0.0
    %635 = vmatprep.subr.mxu0 0.0
    %636 = vmatpush1.msra.mxu0 0.0
    %637 = vmatprep.subr.mxu0 0.0
    %638 = vmatpush1.msra.mxu0 0.0
    %639 = vmatprep.subr.mxu0 0.0
    %640 = vmatpush1.msra.mxu0 0.0
    %641 = vmatprep.subr.mxu0 0.0
    %642 = vmatpush1.msra.mxu0 0.0
    %643 = vmatprep.subr.mxu0 0.0
    %644 = vmatpush1.msra.mxu0 0.0
    %645 = vmatprep.subr.mxu0 0.0
    %646 = vmatpush1.msra.mxu0 0.0
    %647 = vmatprep.subr.mxu0 0.0
    %648 = vmatpush1.msra.mxu0 0.0
    %649 = vmatprep.subr.mxu0 0.0
    %650 = vmatpush1.msra.mxu0 0.0
    %651 = vmatprep.subr.mxu0 0.0
    %652 = vmatpush1.msra.mxu0 0.0
    %653 = vmatprep.subr.mxu0 0.0
    %654 = vmatpush1.msra.mxu0 0.0
    %655 = vmatprep.subr.mxu0 0.0
    %656 = vmatpush1.msra.mxu0 0.0
    %657 = vmatprep.subr.mxu0 0.0
    %658 = vmatpush1.msra.mxu0 0.0
    %659 = vmatprep.subr.mxu0 0.0
    %660 = vmatpush1.msra.mxu0 0.0
    %661 = vmatprep.subr.mxu0 0.0
    %662 = vmatpush1.msra.mxu0 0.0
    %663 = vmatprep.subr.mxu0 0.0
    %664 = vmatpush1.msra.mxu0 0.0
    %665 = vmatprep.subr.mxu0 0.0
    %666 = vmatpush1.msra.mxu0 0.0
    %667 = vmatprep.subr.mxu0 0.0
    %668 = vmatpush1.msra.mxu0 0.0
    %669 = vmatprep.subr.mxu0 0.0
    %670 = vmatpush1.msra.mxu0 0.0
    %671 = vmatprep.subr.mxu0 0.0
    %672 = vmatpush1.msra.mxu0 0.0
    %673 = vmatprep.mubr.f32.mxu0 0.0
    %674 = vmatmul.mubr.f32.gmra.mrb[0].mxu0 %v607
    %v675 = vpop.f32.mrb[0].mxu0
    %v676 = vadd.f32 0.0, %v675
    %v677 = vpop.f32.mrb[0].mxu0
    %678 = vdwg.mxu0
    %v679 = vadd.f32 %v603, %v676
    %v680 = vrot.slane %v114, 7
    %v681 = vrot.slane %v115, 6
    %v682 = vsel %vm151, %v681, %v680
    %v683 = vsel %vm153, %v682, 0
    %685 = vmatprep.subr.mxu0 0.0
    %686 = vmatpush1.msra.mxu0 %v144
    %687 = vmatprep.subr.mxu0 0.0
    %688 = vmatpush1.msra.mxu0 %v145
    %689 = vmatprep.subr.mxu0 0.0
    %690 = vmatpush1.msra.mxu0 %v146
    %691 = vmatprep.subr.mxu0 0.0
    %692 = vmatpush1.msra.mxu0 %v147
    %693 = vmatprep.subr.mxu0 0.0
    %694 = vmatpush1.msra.mxu0 0.0
    %695 = vmatprep.subr.mxu0 0.0
    %696 = vmatpush1.msra.mxu0 0.0
    %697 = vmatprep.subr.mxu0 0.0
    %698 = vmatpush1.msra.mxu0 0.0
    %699 = vmatprep.subr.mxu0 0.0
    %700 = vmatpush1.msra.mxu0 0.0
    %701 = vmatprep.subr.mxu0 0.0
    %702 = vmatpush1.msra.mxu0 0.0
    %703 = vmatprep.subr.mxu0 0.0
    %704 = vmatpush1.msra.mxu0 0.0
    %705 = vmatprep.subr.mxu0 0.0
    %706 = vmatpush1.msra.mxu0 0.0
    %707 = vmatprep.subr.mxu0 0.0
    %708 = vmatpush1.msra.mxu0 0.0
    %709 = vmatprep.subr.mxu0 0.0
    %710 = vmatpush1.msra.mxu0 0.0
    %711 = vmatprep.subr.mxu0 0.0
    %712 = vmatpush1.msra.mxu0 0.0
    %713 = vmatprep.subr.mxu0 0.0
    %714 = vmatpush1.msra.mxu0 0.0
    %715 = vmatprep.subr.mxu0 0.0
    %716 = vmatpush1.msra.mxu0 0.0
    %717 = vmatprep.subr.mxu0 0.0
    %718 = vmatpush1.msra.mxu0 0.0
    %719 = vmatprep.subr.mxu0 0.0
    %720 = vmatpush1.msra.mxu0 0.0
    %721 = vmatprep.subr.mxu0 0.0
    %722 = vmatpush1.msra.mxu0 0.0
    %723 = vmatprep.subr.mxu0 0.0
    %724 = vmatpush1.msra.mxu0 0.0
    %725 = vmatprep.subr.mxu0 0.0
    %726 = vmatpush1.msra.mxu0 0.0
    %727 = vmatprep.subr.mxu0 0.0
    %728 = vmatpush1.msra.mxu0 0.0
    %729 = vmatprep.subr.mxu0 0.0
    %730 = vmatpush1.msra.mxu0 0.0
    %731 = vmatprep.subr.mxu0 0.0
    %732 = vmatpush1.msra.mxu0 0.0
    %733 = vmatprep.subr.mxu0 0.0
    %734 = vmatpush1.msra.mxu0 0.0
    %735 = vmatprep.subr.mxu0 0.0
    %736 = vmatpush1.msra.mxu0 0.0
    %737 = vmatprep.subr.mxu0 0.0
    %738 = vmatpush1.msra.mxu0 0.0
    %739 = vmatprep.subr.mxu0 0.0
    %740 = vmatpush1.msra.mxu0 0.0
    %741 = vmatprep.subr.mxu0 0.0
    %742 = vmatpush1.msra.mxu0 0.0
    %743 = vmatprep.subr.mxu0 0.0
    %744 = vmatpush1.msra.mxu0 0.0
    %745 = vmatprep.subr.mxu0 0.0
    %746 = vmatpush1.msra.mxu0 0.0
    %747 = vmatprep.subr.mxu0 0.0
    %748 = vmatpush1.msra.mxu0 0.0
    %749 = vmatprep.mubr.f32.mxu0 0.0
    %750 = vmatmul.mubr.f32.gmra.mrb[0].mxu0 %v683
    %v751 = vpop.f32.mrb[0].mxu0
    %v752 = vadd.f32 0.0, %v751
    %v753 = vpop.f32.mrb[0].mxu0
    %754 = vdwg.mxu0
    %v755 = vadd.f32 %v679, %v752
    %v756 = vld [vmem:[%s4] sm:$0x1]
    %v758 = vlaneseq
    %v759 = vshrl.u32 %v758, 7
    %v760 = vsub.s32 0, %v759
    %v761 = vrot.slane %v756, %v760
    %v763 = vadd.f32 %v755, %v761
    %vm764 = vcmask 25600
    %765 = vst.msk [vmem:[#allocation2] sm:$0x3] %vm764, %v763
    // Predicated region
    $region22: #{tpu_custom_call.1} parent=1 // pred_check
      _
    $region23: #{tpu_custom_call.1} parent=1 // pred_check_branch
      %767 = sbr.rel (0) target = $region25
    $region24: #{tpu_custom_call.1} parent=1 // pred_region
      %s769 = ssub.s32 32, 32
      %770 = vsyncadd [#allocation3], %s769
      %s772 = sshll.u32 [#allocation2], 4
      %s773 = int_to_ptr.vmem [resolvable:$true] %s772
      %775 = dma.vmem_to_hbm [thread:$0]  %s773, 32, %s5, [#allocation3]
    $region25: #{tpu_custom_call.1} parent=1 // pred_fallthru
      _
    // Predicated region
    $region26: #{tpu_custom_call.1} parent=1 // pred_check
      _
    $region27: #{tpu_custom_call.1} parent=1 // pred_check_branch
      %777 = sbr.rel (0) target = $region29
    $region28: #{tpu_custom_call.1} parent=1 // pred_region
      %778 = dma.done [#allocation3], 32
    $region29: #{tpu_custom_call.1} parent=1 // pred_fallthru
      _
    %779 = vsyncpa [#allocation3], 1

</llo_original>
